<compile_context>
chip_gen: v5e
topology: v5e:2x2
jax: 0.10.0
libtpu: 0.0.40
codegen_flags: <defaults>
</compile_context>

<pallas_src>
import jax
import jax.numpy as jnp
from jax.experimental import pallas as pl
from jax.experimental.pallas import tpu as pltpu


# ----------------------------------------------------------------------------- kernels
def _add_pos_rows_kernel(x_ref, pos_ref, o_ref):
    # x_ref / o_ref / pos_ref: (TM, D) tiles of the row-major (B*S, D) view /
    # the (max_seq_len, D) parameter.  Pure VPU add, lane-dense stores.
    o_ref[...] = (x_ref[...] + pos_ref[...]).astype(o_ref.dtype)


def _add_pos_seq_kernel(x_ref, pos_ref, o_ref):
    # x_ref / o_ref: (1, TS, D) tile of x;  pos_ref: (TS, D) or (max_seq_len, D).
    # Static slice [:TS] is a no-op when the pos block already matches the tile.
    ts = x_ref.shape[1]
    o_ref[...] = (x_ref[...] + pos_ref[:ts, :][None, :, :]).astype(o_ref.dtype)


# ----------------------------------------------------------------------------- helpers
def _pick_tile(seq_len, total_rows, d, itemsize, pack, tile_cap_bytes):
    """Largest multiple-of-`pack` divisor of seq_len whose (tile, d) block stays
    under the per-tile byte cap, preferring an even grid of >= 4 steps
    (megacore load balance + pipeline ramp on v7x)."""
    divisors = [t for t in range(pack, seq_len + 1, pack) if seq_len % t == 0]
    under_cap = [t for t in divisors if t * d * itemsize <= tile_cap_bytes] or divisors[:1]

    def steps(t):
        return total_rows // t

    for ok in (lambda t: steps(t) >= 4 and steps(t) % 2 == 0,
               lambda t: steps(t) >= 4,
               lambda t: True):
        cands = [t for t in under_cap if ok(t)]
        if cands:
            return max(cands)
    return under_cap[0]


def _vmem_limit_bytes(per_step_bytes):
    # Explicit scoped-VMEM limit: >= 32 MiB (covers v5e's 16 MiB scoped default),
    # generous headroom over the pipeline's double-buffered tiles, capped at
    # 48 MiB (< v7x's 64 MiB physical VMEM, far under v5e/v6e's 128 MiB).
    return int(min(max(32 << 20, 2 * per_step_bytes + (4 << 20)), 48 << 20))


# ----------------------------------------------------------------------------- wrapper
def learnable_positional_encoding(
    x: jax.Array,
    pos_embedding: jax.Array,
    *,
    donate_x: bool = False,
    tile_cap_bytes: int = 1 << 20,  # ~1 MiB per x tile: HBM roofline plateau on v6e,
                                    # tiny vs. every chip's VMEM once double-buffered.
) -> jax.Array:
    """x: (B, S, D); pos_embedding: (max_seq_len, D) with max_seq_len >= S."""
    b, s, d = x.shape
    max_seq_len, d2 = pos_embedding.shape
    assert d2 == d, "d_model mismatch between x and pos_embedding"
    assert max_seq_len >= s, "seq_len exceeds max_seq_len"

    itemsize = jnp.dtype(x.dtype).itemsize
    pack = max(8, 32 // itemsize)  # sublane packing: 8 f32 / 16 bf16 / 32 int8

    common = dict(
        cost_estimate=pl.CostEstimate(
            flops=b * s * d,
            transcendentals=0,
            bytes_accessed=(2 * b * s * d + s * d) * itemsize,
        ),
    )
    if donate_x:
        # Reuse x's HBM buffer for the output when the caller donates it.
        common["input_output_aliases"] = {0: 0}

    # ------------------------------------------------------------------ fast path
    if d % 128 == 0 and s % pack == 0:
        total_rows = b * s
        tm = _pick_tile(s, total_rows, d, itemsize, pack, tile_cap_bytes)
        seq_blocks = s // tm            # pos block index repeats every seq_blocks steps
        grid = (total_rows // tm,)      # divisor tile -> no partial tail block

        x2 = x.reshape(total_rows, d)   # free row-major reshape

        # double-buffered x + out tiles, double-buffered pos tile
        per_step_bytes = (2 * 2 + 2) * tm * d * itemsize

        out2 = pl.pallas_call(
            _add_pos_rows_kernel,
            out_shape=jax.ShapeDtypeStruct((total_rows, d), x.dtype),
            grid_spec=pltpu.PrefetchScalarGridSpec(
                num_scalar_prefetch=0,
                grid=grid,
                in_specs=[
                    # (TM, D) contiguous tile of x rows.
                    pl.BlockSpec((tm, d), lambda i: (i, 0)),
                    # (TM, D) tile of the FULL parameter; since TM | S a tile never
                    # straddles a batch, so its positions are block (i % seq_blocks).
                    pl.BlockSpec((tm, d), lambda i: (i % seq_blocks, 0)),
                ],
                out_specs=pl.BlockSpec((tm, d), lambda i: (i, 0)),
            ),
            compiler_params=pltpu.CompilerParams(
                dimension_semantics=("parallel",),
                vmem_limit_bytes=_vmem_limit_bytes(per_step_bytes),
            ),
            **common,
        )(x2, pos_embedding)
        return out2.reshape(b, s, d)

    # ------------------------------------------------------------------ fallback
    # Odd d_model and/or seq_len not a multiple of the sublane pack.  Tile over
    # (batch, seq) with 3-D blocks so we never stage the whole tensor in VMEM.
    if s % pack == 0:
        ts = _pick_tile(s, b * s, d, itemsize, pack, tile_cap_bytes)
        pos_rows = ts
        pos_spec = pl.BlockSpec((ts, d), lambda bi, si: (si, 0))
    else:
        # Full-extent seq block (always a legal block shape); pass the whole
        # parameter and slice the first S rows inside the kernel (static slice),
        # avoiding any wrapper-side copy of the parameter.
        ts = s
        pos_rows = max_seq_len
        pos_spec = pl.BlockSpec((max_seq_len, d), lambda bi, si: (0, 0))
        # TODO(synk): for extremely large S*D with unaligned S this single-seq-block
        # tile could approach the VMEM limit; a masked partial-seq tiling would be
        # needed in that regime.

    grid = (b, s // ts)
    per_step_bytes = (2 * 2 * ts + 2 * pos_rows) * d * itemsize

    out = pl.pallas_call(
        _add_pos_seq_kernel,
        out_shape=jax.ShapeDtypeStruct((b, s, d), x.dtype),
        grid_spec=pltpu.PrefetchScalarGridSpec(
            num_scalar_prefetch=0,
            grid=grid,
            in_specs=[
                pl.BlockSpec((1, ts, d), lambda bi, si: (bi, si, 0)),
                pos_spec,
            ],
            out_specs=pl.BlockSpec((1, ts, d), lambda bi, si: (bi, si, 0)),
        ),
        compiler_params=pltpu.CompilerParams(
            dimension_semantics=("parallel", "parallel"),
            vmem_limit_bytes=_vmem_limit_bytes(per_step_bytes),
        ),
        **common,
    )(x, pos_embedding)
    return out


# ----------------------------------------------------------------------------- demo
if __name__ == "__main__":
    key = jax.random.PRNGKey(0)
    kx1, kp1, kx2, kp2 = jax.random.split(key, 4)

    # Case 1: d_model multiple of 128 -> row-tiled (B*S, D) fast path.
    b1, s1, d1, msl1 = 2, 8, 128, 16
    x1 = jax.random.normal(kx1, (b1, s1, d1), dtype=jnp.float32)
    # Parameter init mirroring torch.randn(max_seq_len, d_model) * 0.02.
    pos1 = jax.random.normal(kp1, (msl1, d1), dtype=jnp.float32) * 0.02
    out1 = learnable_positional_encoding(x1, pos1)
    jax.block_until_ready(out1)
    ref1 = x1 + pos1[:s1, :][None, :, :]
    assert out1.shape == (b1, s1, d1)
    assert jnp.allclose(out1, ref1, atol=1e-6), "fast-path mismatch vs reference"

    # Case 2: small / non-128-aligned d_model -> 3-D fallback path.
    b2, s2, d2, msl2 = 2, 8, 32, 16
    x2 = jax.random.normal(kx2, (b2, s2, d2), dtype=jnp.float32)
    pos2 = jax.random.normal(kp2, (msl2, d2), dtype=jnp.float32) * 0.02
    out2 = learnable_positional_encoding(x2, pos2)
    jax.block_until_ready(out2)
    ref2 = x2 + pos2[:s2, :][None, :, :]
    assert out2.shape == (b2, s2, d2)
    assert jnp.allclose(out2, ref2, atol=1e-6), "fallback-path mismatch vs reference"

    print("KERNEL_OK")
</pallas_src>

<mosaic_0001>
module attributes {stable_mosaic.version = 11 : i64} {
  func.func @_add_pos_rows_kernel(%arg0: i32, %arg1: memref<8x128xf32, #tpu.memory_space<vmem>>, %arg2: memref<8x128xf32, #tpu.memory_space<vmem>>, %arg3: memref<8x128xf32, #tpu.memory_space<vmem>>) attributes {dimension_semantics = [#tpu.dimension_semantics<parallel>], iteration_bounds = array<i64: 2>, scalar_prefetch = 0 : i64, scratch_operands = 0 : i64, tpu.core_type = #tpu.core_type<tc>, window_params = [{transform_indices = @transform_0, window_bounds = array<i64: 8, 128>}, {transform_indices = @transform_1, window_bounds = array<i64: 8, 128>}, {transform_indices = @transform_2, window_bounds = array<i64: 8, 128>}]} {
    %c0 = arith.constant 0 : index
    %c0_0 = arith.constant 0 : index
    %0 = vector.load %arg1[%c0, %c0_0] : memref<8x128xf32, #tpu.memory_space<vmem>>, vector<8x128xf32>
    %c0_1 = arith.constant 0 : index
    %c0_2 = arith.constant 0 : index
    %1 = vector.load %arg2[%c0_1, %c0_2] : memref<8x128xf32, #tpu.memory_space<vmem>>, vector<8x128xf32>
    %2 = arith.addf %0, %1 : vector<8x128xf32>
    %c0_3 = arith.constant 0 : index
    %c0_4 = arith.constant 0 : index
    %3 = vector.load %arg3[%c0_3, %c0_4] : memref<8x128xf32, #tpu.memory_space<vmem>>, vector<8x128xf32>
    tpu.vector_store %arg3[%c0_3, %c0_4], %2 {strides = array<i32>} : memref<8x128xf32, #tpu.memory_space<vmem>>, vector<8x128xf32>,
    return
  }
  func.func @transform_0(%arg0: i32) -> (i32, i32) {
    %c0_i32 = arith.constant 0 : i32
    %c0_i32_0 = arith.constant 0 : i32
    return %arg0, %c0_i32 : i32, i32
  }
  func.func @transform_1(%arg0: i32) -> (i32, i32) {
    %c1_i32 = arith.constant 1 : i32
    %c0_i32 = arith.constant 0 : i32
    %0 = arith.cmpi eq, %c1_i32, %c0_i32 : i32
    %c1_i32_0 = arith.constant 1 : i32
    %1 = arith.select %0, %c1_i32_0, %c1_i32 : i32
    %2 = arith.remsi %arg0, %1 : i32
    %c0_i32_1 = arith.constant 0 : i32
    %3 = arith.cmpi ne, %2, %c0_i32_1 : i32
    %c0_i32_2 = arith.constant 0 : i32
    %4 = arith.cmpi slt, %2, %c0_i32_2 : i32
    %c0_i32_3 = arith.constant 0 : i32
    %5 = arith.cmpi slt, %1, %c0_i32_3 : i32
    %6 = arith.xori %4, %5 : i1
    %7 = arith.andi %6, %3 : i1
    %8 = arith.addi %2, %1 : i32
    %9 = arith.select %7, %8, %2 : i32
    %c0_i32_4 = arith.constant 0 : i32
    %c0_i32_5 = arith.constant 0 : i32
    return %9, %c0_i32_4 : i32, i32
  }
  func.func @transform_2(%arg0: i32) -> (i32, i32) {
    %c0_i32 = arith.constant 0 : i32
    %c0_i32_0 = arith.constant 0 : i32
    return %arg0, %c0_i32 : i32, i32
  }
}

</mosaic_0001>

<llo_original>
// kernel: tpu_custom_call.1
$region0: #{tpu_custom_call.1}
  #allocation0 [shape = 'u32[]', space=smem, size = 0x4, offset = 0x4, fixed_abs, tag = 'smem constant byte address 0x4 - core index']
  #allocation1 [shape = 'u32[72,128]{1,0:T(1,128)}', space=vmem, size = 0x9000, scoped, tag = 'internal scratch']
  %s0 = inlined_call_operand.hbm [shape: f32[16,128], index: 0, kind: input, shape index: {}]
  %s1 = inlined_call_operand.hbm [shape: f32[16,128], index: 1, kind: input, shape index: {}]
  %s2 = inlined_call_operand.hbm [shape: f32[16,128], index: 2, kind: output, shape index: {}]
  %s3 = sld [smem:[#allocation0]]
  $region49: #{tpu_custom_call.1} parent=0
    _
  %s5 = ssub.s32 1, %s3
  %s6 = scalar_select 0, %s5, %s3
  $region1: #{tpu_custom_call.1} parent=0
    #allocation2 [shape = 'u8[8192]{0}', space=vmem, size = 0x2000, scoped, tag = 'input window, operand 0']
    #allocation3 [shape = 's32[2]{0}', space=sflag, size = 0x8, scoped, tag = 'scoped memory for tpu_custom_call.1']
    #allocation4 [shape = 's32[2]{0}', space=sflag, size = 0x8, scoped, tag = 'scoped memory for tpu_custom_call.1']
    #allocation5 [shape = 'u8[4096]{0}', space=vmem, size = 0x1000, scoped, tag = 'input window, operand 1, single buffered']
    #allocation6 [shape = 's32[1]{0}', space=sflag, size = 0x4, scoped, tag = 'scoped memory for tpu_custom_call.1']
    #allocation7 [shape = 'u8[8192]{0}', space=vmem, size = 0x2000, scoped, tag = 'output window, operand 0']
    %7 = vsyncpa [#allocation3], 0
    %s8 = scalar_lea.sflag [#allocation3], 1
    %9 = vsyncpa %s8, 0
    %10 = vsyncpa [#allocation6], 0
    %11 = vsyncpa [#allocation4], 0
    %s12 = scalar_lea.sflag [#allocation4], 1
    %13 = vsyncpa %s12, 0
    loop: start=0, step=1, limit=4
    $region2: #{tpu_custom_call.1} parent=1 // loop_pre_header
      _
    $region3: #{tpu_custom_call.1} parent=1 // loop_header
      %s15 = sphi 0, %s19
      %p16 = scmp.ge.s32.totalorder %s15, 4
      %s25 = sphi 0, %s27
      %s28 = sphi 0, %s25
      %s29 = sphi 0, %s28
      %s45 = sphi 0, %s29
      %s49 = sphi 0, %s49
      %s51 = sphi 0, %s49
      %s52 = sphi 0, %s51
      %s66 = sphi 0, %s52
      %s72 = sphi 0, %s74
      %s75 = sphi 0, %s72
      %s76 = sphi 0, %s75
      %s92 = sphi 0, %s76
    $region4: #{tpu_custom_call.1} parent=1 // loop_header_branch
      %18 = sbr.rel (%p16) target = $region8
    $region5: #{tpu_custom_call.1} parent=1 // loop_body
      %s20 = ssub.s32 %s15, 1
      %s21 = ssub.s32 %s15, 2
      %s22 = sadd.s32 %s15, 1
      %s23 = ssub.s32 %s15, %s22
      %p24 = scmp.eq.s32.totalorder %s23, 0
      %s26 = sadd.s32 %s25, 1
      %s27 = scalar_select %p24, %s25, %s26
      %p30 = pneg %p24
      %p31 = scmp.eq.s32.totalorder %s15, 1
      %p32 = por %p30, %p31
      %p33 = scmp.ne.s32.totalorder %s25, %s28
      %p34 = scmp.eq.s32.totalorder %s15, 0
      %p35 = por %p33, %p34
      %p36 = scmp.ne.s32.totalorder %s25, %s28
      %p37 = scmp.eq.s32.totalorder %s20, 1
      %p38 = por %p36, %p37
      %p39 = scmp.ne.s32.totalorder %s28, %s29
      %p40 = scmp.eq.s32.totalorder %s20, 0
      %p41 = por %p39, %p40
      %p42 = scmp.ne.s32.totalorder %s28, %s29
      %p43 = scmp.eq.s32.totalorder %s21, 1
      %p44 = por %p42, %p43
      %p46 = scmp.ne.s32.totalorder %s29, %s45
      %p47 = scmp.eq.s32.totalorder %s21, 0
      %p48 = por %p46, %p47
      %s50 = sadd.s32 %s49, 1
      %p53 = scmp.eq.s32.totalorder %s15, 1
      %p54 = scmp.ne.s32.totalorder %s49, %s51
      %p55 = scmp.eq.s32.totalorder %s15, 0
      %p56 = por %p54, %p55
      %p57 = scmp.ne.s32.totalorder %s49, %s51
      %p58 = scmp.eq.s32.totalorder %s20, 1
      %p59 = por %p57, %p58
      %p60 = scmp.ne.s32.totalorder %s51, %s52
      %p61 = scmp.eq.s32.totalorder %s20, 0
      %p62 = por %p60, %p61
      %p63 = scmp.ne.s32.totalorder %s51, %s52
      %p64 = scmp.eq.s32.totalorder %s21, 1
      %p65 = por %p63, %p64
      %p67 = scmp.ne.s32.totalorder %s52, %s66
      %p68 = scmp.eq.s32.totalorder %s21, 0
      %p69 = por %p67, %p68
      %s70 = ssub.s32 %s15, %s22
      %p71 = scmp.eq.s32.totalorder %s70, 0
      %s73 = sadd.s32 %s72, 1
      %s74 = scalar_select %p71, %s72, %s73
      %p77 = pneg %p71
      %p78 = scmp.eq.s32.totalorder %s15, 1
      %p79 = por %p77, %p78
      %p80 = scmp.ne.s32.totalorder %s72, %s75
      %p81 = scmp.eq.s32.totalorder %s15, 0
      %p82 = por %p80, %p81
      %p83 = scmp.ne.s32.totalorder %s72, %s75
      %p84 = scmp.eq.s32.totalorder %s20, 1
      %p85 = por %p83, %p84
      %p86 = scmp.ne.s32.totalorder %s75, %s76
      %p87 = scmp.eq.s32.totalorder %s20, 0
      %p88 = por %p86, %p87
      %p89 = scmp.ne.s32.totalorder %s75, %s76
      %p90 = scmp.eq.s32.totalorder %s21, 1
      %p91 = por %p89, %p90
      %p93 = scmp.ne.s32.totalorder %s76, %s92
      %p94 = scmp.eq.s32.totalorder %s21, 0
      %p95 = por %p93, %p94
      %p96 = scmp.le.s32.totalorder 1, %s15
      %p97 = scmp.lt.s32.totalorder %s15, 3
      %p98 = pnand %p96, %p97
      %p99 = pneg %p98
      // Predicated region
      $region9: #{tpu_custom_call.1} parent=5 // pred_check
        _
      $region10: #{tpu_custom_call.1} parent=5 // pred_check_branch
        %101 = sbr.rel (%p98) target = $region12
      $region11: #{tpu_custom_call.1} parent=5 // pred_region
        %s102 = ssub.s32 %s15, 1
        // Predicated region
        $region13: #{tpu_custom_call.1} parent=11 // pred_check
          %p103 = pneg %p62
        $region14: #{tpu_custom_call.1} parent=11 // pred_check_branch
          %105 = sbr.rel (%p103) target = $region16
        $region15: #{tpu_custom_call.1} parent=11 // pred_region
          %107 = vsyncadd [#allocation6], 0
          %s109 = sshll.u32 %s1, 4
          %s110 = int_to_ptr.hbm [resolvable:$true] %s109
          %s111 = sshll.u32 [#allocation5], 4
          %s112 = int_to_ptr.vmem [resolvable:$true] %s111
          %114 = dma.hbm_to_vmem [thread:$0]  %s110, 128, %s112, [#allocation6]
        $region16: #{tpu_custom_call.1} parent=11 // pred_fallthru
          _
      $region12: #{tpu_custom_call.1} parent=5 // pred_fallthru
        _
      %p115 = scmp.lt.s32.totalorder %s15, 2
      // Predicated region
      $region17: #{tpu_custom_call.1} parent=5 // pred_check
        %p116 = pneg %p115
      $region18: #{tpu_custom_call.1} parent=5 // pred_check_branch
        %118 = sbr.rel (%p116) target = $region20
      $region19: #{tpu_custom_call.1} parent=5 // pred_region
        // Predicated region
        $region21: #{tpu_custom_call.1} parent=19 // pred_check
          %p119 = pneg %p35
        $region22: #{tpu_custom_call.1} parent=19 // pred_check_branch
          %121 = sbr.rel (%p119) target = $region24
        $region23: #{tpu_custom_call.1} parent=19 // pred_region
          %s122 = sand.u32 %s25, 1
          %s123 = scalar_lea.sflag [#allocation3], %s122
          %s124 = sand.u32 %s25, 1
          %s125 = smul.addr %s124, 8
          %s126 = scalar_lea.vmem [#allocation2], %s125
          %128 = vsyncadd %s123, 0
          %s129 = smul.addr %s15, 8
          %s130 = scalar_lea.hbm %s0, %s129
          %s132 = sshll.u32 %s130, 4
          %s133 = int_to_ptr.hbm [resolvable:$true] %s132
          %s134 = sshll.u32 %s126, 4
          %s135 = int_to_ptr.vmem [resolvable:$true] %s134
          %137 = dma.hbm_to_vmem [thread:$0]  %s133, 128, %s135, %s123
        $region24: #{tpu_custom_call.1} parent=19 // pred_fallthru
          _
      $region20: #{tpu_custom_call.1} parent=5 // pred_fallthru
        _
      %p138 = scmp.le.s32.totalorder 1, %s15
      %p139 = scmp.lt.s32.totalorder %s15, 3
      %p140 = pnand %p138, %p139
      %p141 = pneg %p140
      // Predicated region
      $region25: #{tpu_custom_call.1} parent=5 // pred_check
        _
      $region26: #{tpu_custom_call.1} parent=5 // pred_check_branch
        %143 = sbr.rel (%p140) target = $region28
      $region27: #{tpu_custom_call.1} parent=5 // pred_region
        %s144 = ssub.s32 %s15, 1
        %s145 = sand.u32 %s28, 1
        %s146 = scalar_lea.sflag [#allocation3], %s145
        %s147 = sand.u32 %s28, 1
        %s148 = smul.addr %s147, 8
        %s149 = scalar_lea.vmem [#allocation2], %s148
        // Predicated region
        $region29: #{tpu_custom_call.1} parent=27 // pred_check
          %p150 = pneg %p41
        $region30: #{tpu_custom_call.1} parent=27 // pred_check_branch
          %152 = sbr.rel (%p150) target = $region32
        $region31: #{tpu_custom_call.1} parent=27 // pred_region
          %154 = dma.done %s146, 128
        $region32: #{tpu_custom_call.1} parent=27 // pred_fallthru
          _
        // Predicated region
        $region33: #{tpu_custom_call.1} parent=27 // pred_check
          %p155 = pneg %p62
        $region34: #{tpu_custom_call.1} parent=27 // pred_check_branch
          %157 = sbr.rel (%p155) target = $region36
        $region35: #{tpu_custom_call.1} parent=27 // pred_region
          %159 = dma.done [#allocation6], 128
        $region36: #{tpu_custom_call.1} parent=27 // pred_fallthru
          _
        %s160 = sand.u32 %s28, 1
        %s161 = scalar_lea.sflag [#allocation3], %s160
        %s162 = sand.u32 %s28, 1
        %s163 = smul.addr %s162, 8
        %s164 = scalar_lea.vmem [#allocation2], %s163
        %p165 = pneg %p41
        %p166 = pneg %p38
        %p167 = pneg %p62
        %p168 = pneg %p59
        %p169 = pneg %p88
        %p170 = pneg %p85
        %s171 = sand.u32 %s75, 1
        %s172 = scalar_lea.sflag [#allocation4], %s171
        %s173 = sand.u32 %s75, 1
        %s174 = smul.addr %s173, 8
        %s175 = scalar_lea.vmem [#allocation7], %s174
        %v176 = vld [vmem:[%s149] sm:$0xff]
        %v177 = vld [vmem:[#allocation5] sm:$0xff]
        %v178 = vadd.f32 %v176, %v177
        %179 = vst [vmem:[%s175] sm:$0xff] %v178
        %s180 = sand.u32 %s75, 1
        %s181 = scalar_lea.sflag [#allocation4], %s180
        %s182 = sand.u32 %s75, 1
        %s183 = smul.addr %s182, 8
        %s184 = scalar_lea.vmem [#allocation7], %s183
        // Predicated region
        $region37: #{tpu_custom_call.1} parent=27 // pred_check
          %p185 = pneg %p85
        $region38: #{tpu_custom_call.1} parent=27 // pred_check_branch
          %187 = sbr.rel (%p185) target = $region40
        $region39: #{tpu_custom_call.1} parent=27 // pred_region
          %189 = vsyncadd %s181, 0
          %s190 = smul.addr %s20, 8
          %s191 = scalar_lea.hbm %s2, %s190
          %s193 = sshll.u32 %s184, 4
          %s194 = int_to_ptr.vmem [resolvable:$true] %s193
          %s195 = sshll.u32 %s191, 4
          %s196 = int_to_ptr.hbm [resolvable:$true] %s195
          %198 = dma.vmem_to_hbm [thread:$0]  %s194, 128, %s196, %s181
        $region40: #{tpu_custom_call.1} parent=27 // pred_fallthru
          _
      $region28: #{tpu_custom_call.1} parent=5 // pred_fallthru
        _
      %p199 = scmp.le.s32.totalorder 2, %s15
      // Predicated region
      $region41: #{tpu_custom_call.1} parent=5 // pred_check
        %p200 = pneg %p199
      $region42: #{tpu_custom_call.1} parent=5 // pred_check_branch
        %202 = sbr.rel (%p200) target = $region44
      $region43: #{tpu_custom_call.1} parent=5 // pred_region
        %s203 = ssub.s32 %s15, 2
        // Predicated region
        $region45: #{tpu_custom_call.1} parent=43 // pred_check
          %p204 = pneg %p91
        $region46: #{tpu_custom_call.1} parent=43 // pred_check_branch
          %206 = sbr.rel (%p204) target = $region48
        $region47: #{tpu_custom_call.1} parent=43 // pred_region
          %s207 = sand.u32 %s76, 1
          %s208 = scalar_lea.sflag [#allocation4], %s207
          %s209 = sand.u32 %s76, 1
          %s210 = smul.addr %s209, 8
          %s211 = scalar_lea.vmem [#allocation7], %s210
          %213 = dma.done %s208, 128
        $region48: #{tpu_custom_call.1} parent=43 // pred_fallthru
          _
      $region44: #{tpu_custom_call.1} parent=5 // pred_fallthru
        _
    $region6: #{tpu_custom_call.1} parent=1 // loop_footer
      %s19 = sadd.s32 1, %s15
    $region7: #{tpu_custom_call.1} parent=1 // loop_footer_branch
      %14 = sbr.rel target = $region3
    $region8: #{tpu_custom_call.1} parent=1 // loop_exit
      _
    %214 = vsyncpa [#allocation3], 1
    %s215 = scalar_lea.sflag [#allocation3], 1
    %216 = vsyncpa %s215, 1
    %217 = vsyncpa [#allocation6], 1
    %218 = vsyncpa [#allocation4], 1
    %s219 = scalar_lea.sflag [#allocation4], 1
    %220 = vsyncpa %s219, 1

</llo_original>
